<compile_context>
chip_gen: v5e
topology: v5e:2x2
jax: 0.10.0
libtpu: 0.0.40
codegen_flags: <defaults>
</compile_context>

<pallas_src>
import jax
import jax.numpy as jnp
from jax.experimental import pallas as pl
from jax.experimental.pallas import tpu as pltpu

_MIN_MXU_K = 8  # contraction dims below this run on the VPU instead of the MXU


def _make_mlp_kernel(num_layers):
    """Kernel over one batch tile: refs = (x, W1, b1, ..., WL, bL, out)."""

    def kernel(x_ref, *refs):
        o_ref = refs[-1]
        h = x_ref[...]                                   # (d_in, TB), batch on lanes
        for l in range(num_layers):
            w = refs[2 * l][...]                         # (out, in)  -- PyTorch layout
            b = refs[2 * l + 1][...]                     # (out, 1)
            out_dim, in_dim = w.shape
            if in_dim < _MIN_MXU_K:
                # Skinny K: unrolled VPU broadcast-MACs; bias folded into the
                # accumulator init (single hoisted broadcast per grid step).
                acc = jnp.broadcast_to(b, (out_dim, h.shape[1])).astype(jnp.float32)
                for i in range(in_dim):
                    acc = acc + w[:, i:i + 1] * h[i:i + 1, :]
                h = acc
            else:
                h = jnp.dot(w, h, preferred_element_type=jnp.float32) + b
            if l < num_layers - 1:
                h = jnp.maximum(h, 0.0)                  # ReLU on hidden layers only
        o_ref[...] = h.astype(o_ref.dtype)

    return kernel


def net_relu_xavier(x, params, *, block_batch=512):
    """x: (batch, d_in) f32; params: [(W (out,in), b (out,))] in PyTorch layout."""
    assert block_batch % 128 == 0, "block_batch must be a multiple of 128 lanes"
    num_layers = len(params)
    batch, d_in = x.shape
    assert d_in == params[0][0].shape[1], "input feature dim mismatch"
    d_out = params[-1][0].shape[0]

    # Feature-major layout: batch rides the TPU lane axis (lane-dense everywhere).
    xt = x.T                                             # (d_in, batch)

    if batch <= block_batch:
        tb = batch
        padded = batch
    else:
        tb = block_batch
        padded = tb * pl.cdiv(batch, tb)
        if padded != batch:
            xt = jnp.pad(xt, ((0, 0), (0, padded - batch)))
    grid = (padded // tb,)

    flat_params = []
    in_specs = [pl.BlockSpec((d_in, tb), lambda i: (0, i))]
    for w, b in params:
        b2 = b.reshape(-1, 1)                            # (out, 1): broadcasts over lanes
        flat_params += [w, b2]
        in_specs += [
            pl.BlockSpec(w.shape, lambda i: (0, 0)),     # weights stay VMEM-resident
            pl.BlockSpec(b2.shape, lambda i: (0, 0)),
        ]

    flops = 2 * batch * sum(w.shape[0] * w.shape[1] for w, _ in params)
    bytes_accessed = (x.size + batch * d_out) * x.dtype.itemsize + sum(
        w.size * w.dtype.itemsize + b.size * b.dtype.itemsize for w, b in params
    )

    out_t = pl.pallas_call(
        _make_mlp_kernel(num_layers),
        out_shape=jax.ShapeDtypeStruct((d_out, padded), x.dtype),
        grid=grid,
        in_specs=in_specs,
        out_specs=pl.BlockSpec((d_out, tb), lambda i: (0, i)),
        compiler_params=pltpu.CompilerParams(
            dimension_semantics=("parallel",),
        ),
        cost_estimate=pl.CostEstimate(
            flops=flops, transcendentals=0, bytes_accessed=bytes_accessed
        ),
    )(xt, *flat_params)

    return out_t[:, :batch].T                            # back to (batch, d_out)


def init_params(key, layers):
    """Mirror the PyTorch module's init:
       weights: xavier_normal_ (std = sqrt(2/(fan_in+fan_out))), shape (out, in)
       biases : default nn.Linear init, uniform(-1/sqrt(fan_in), 1/sqrt(fan_in))."""
    params = []
    for fan_in, fan_out in zip(layers, layers[1:]):
        key, kw, kb = jax.random.split(key, 3)
        std = (2.0 / (fan_in + fan_out)) ** 0.5
        w = std * jax.random.normal(kw, (fan_out, fan_in), dtype=jnp.float32)
        bound = 1.0 / (fan_in ** 0.5)
        b = jax.random.uniform(kb, (fan_out,), minval=-bound, maxval=bound,
                               dtype=jnp.float32)
        params.append((w, b))
    return params


def reference_forward(x, params):
    """Plain-JAX reference (full-precision matmuls) for correctness checking."""
    h = x
    for l, (w, b) in enumerate(params):
        h = jnp.dot(h, w.T, precision=jax.lax.Precision.HIGHEST) + b
        if l < len(params) - 1:
            h = jnp.maximum(h, 0.0)
    return h


if __name__ == "__main__":
    layers = [4, 32, 32, 4]

    key = jax.random.PRNGKey(0)
    key, kx = jax.random.split(key)
    batch = 1024                      # small, but exercises a 2-step pipelined grid
    x = jax.random.normal(kx, (batch, layers[0]), dtype=jnp.float32)
    params = init_params(key, layers)

    out = net_relu_xavier(x, params, block_batch=512)
    out = jax.block_until_ready(out)

    ref = reference_forward(x, params)
    assert out.shape == (batch, layers[-1])
    assert jnp.allclose(out, ref, atol=1e-3, rtol=1e-3), "mismatch vs reference"

    print("KERNEL_OK")
</pallas_src>

<mosaic_0001>
module attributes {stable_mosaic.version = 11 : i64} {
  func.func @kernel(%arg0: i32, %arg1: memref<4x512xf32, #tpu.memory_space<vmem>>, %arg2: memref<32x4xf32, #tpu.memory_space<vmem>>, %arg3: memref<32x1xf32, #tpu.memory_space<vmem>>, %arg4: memref<32x32xf32, #tpu.memory_space<vmem>>, %arg5: memref<32x1xf32, #tpu.memory_space<vmem>>, %arg6: memref<4x32xf32, #tpu.memory_space<vmem>>, %arg7: memref<4x1xf32, #tpu.memory_space<vmem>>, %arg8: memref<4x512xf32, #tpu.memory_space<vmem>>) attributes {dimension_semantics = [#tpu.dimension_semantics<parallel>], iteration_bounds = array<i64: 2>, scalar_prefetch = 0 : i64, scratch_operands = 0 : i64, tpu.core_type = #tpu.core_type<tc>, window_params = [{transform_indices = @transform_0, window_bounds = array<i64: 4, 512>}, {pipeline_mode = #tpu.pipeline_mode<synchronous>, transform_indices = @transform_1, window_bounds = array<i64: 32, 4>}, {pipeline_mode = #tpu.pipeline_mode<synchronous>, transform_indices = @transform_2, window_bounds = array<i64: 32, 1>}, {pipeline_mode = #tpu.pipeline_mode<synchronous>, transform_indices = @transform_3, window_bounds = array<i64: 32, 32>}, {pipeline_mode = #tpu.pipeline_mode<synchronous>, transform_indices = @transform_4, window_bounds = array<i64: 32, 1>}, {pipeline_mode = #tpu.pipeline_mode<synchronous>, transform_indices = @transform_5, window_bounds = array<i64: 4, 32>}, {pipeline_mode = #tpu.pipeline_mode<synchronous>, transform_indices = @transform_6, window_bounds = array<i64: 4, 1>}, {transform_indices = @transform_7, window_bounds = array<i64: 4, 512>}]} {
    %c0 = arith.constant 0 : index
    %c0_0 = arith.constant 0 : index
    %0 = vector.load %arg1[%c0, %c0_0] : memref<4x512xf32, #tpu.memory_space<vmem>>, vector<4x512xf32>
    %c0_1 = arith.constant 0 : index
    %c0_2 = arith.constant 0 : index
    %1 = vector.load %arg2[%c0_1, %c0_2] : memref<32x4xf32, #tpu.memory_space<vmem>>, vector<32x4xf32>
    %c0_3 = arith.constant 0 : index
    %c0_4 = arith.constant 0 : index
    %2 = vector.load %arg3[%c0_3, %c0_4] : memref<32x1xf32, #tpu.memory_space<vmem>>, vector<32x1xf32>
    %3 = vector.shape_cast %2 : vector<32x1xf32> to vector<32x1xf32>
    %4 = vector.broadcast %3 : vector<32x1xf32> to vector<32x512xf32>
    %5 = vector.extract_strided_slice %1 {offsets = [0, 0], sizes = [32, 1], strides = [1, 1]} : vector<32x4xf32> to vector<32x1xf32>
    %6 = vector.extract_strided_slice %0 {offsets = [0, 0], sizes = [1, 512], strides = [1, 1]} : vector<4x512xf32> to vector<1x512xf32>
    %7 = vector.broadcast %5 : vector<32x1xf32> to vector<32x512xf32>
    %8 = vector.broadcast %6 : vector<1x512xf32> to vector<32x512xf32>
    %9 = arith.mulf %7, %8 : vector<32x512xf32>
    %10 = arith.addf %4, %9 : vector<32x512xf32>
    %11 = vector.extract_strided_slice %1 {offsets = [0, 1], sizes = [32, 1], strides = [1, 1]} : vector<32x4xf32> to vector<32x1xf32>
    %12 = vector.extract_strided_slice %0 {offsets = [1, 0], sizes = [1, 512], strides = [1, 1]} : vector<4x512xf32> to vector<1x512xf32>
    %13 = vector.broadcast %11 : vector<32x1xf32> to vector<32x512xf32>
    %14 = vector.broadcast %12 : vector<1x512xf32> to vector<32x512xf32>
    %15 = arith.mulf %13, %14 : vector<32x512xf32>
    %16 = arith.addf %10, %15 : vector<32x512xf32>
    %17 = vector.extract_strided_slice %1 {offsets = [0, 2], sizes = [32, 1], strides = [1, 1]} : vector<32x4xf32> to vector<32x1xf32>
    %18 = vector.extract_strided_slice %0 {offsets = [2, 0], sizes = [1, 512], strides = [1, 1]} : vector<4x512xf32> to vector<1x512xf32>
    %19 = vector.broadcast %17 : vector<32x1xf32> to vector<32x512xf32>
    %20 = vector.broadcast %18 : vector<1x512xf32> to vector<32x512xf32>
    %21 = arith.mulf %19, %20 : vector<32x512xf32>
    %22 = arith.addf %16, %21 : vector<32x512xf32>
    %23 = vector.extract_strided_slice %1 {offsets = [0, 3], sizes = [32, 1], strides = [1, 1]} : vector<32x4xf32> to vector<32x1xf32>
    %24 = vector.extract_strided_slice %0 {offsets = [3, 0], sizes = [1, 512], strides = [1, 1]} : vector<4x512xf32> to vector<1x512xf32>
    %25 = vector.broadcast %23 : vector<32x1xf32> to vector<32x512xf32>
    %26 = vector.broadcast %24 : vector<1x512xf32> to vector<32x512xf32>
    %27 = arith.mulf %25, %26 : vector<32x512xf32>
    %28 = arith.addf %22, %27 : vector<32x512xf32>
    %cst = arith.constant 0.000000e+00 : f32
    %29 = vector.broadcast %cst : f32 to vector<32x512xf32>
    %30 = arith.maximumf %28, %29 : vector<32x512xf32>
    %c0_5 = arith.constant 0 : index
    %c0_6 = arith.constant 0 : index
    %31 = vector.load %arg4[%c0_5, %c0_6] : memref<32x32xf32, #tpu.memory_space<vmem>>, vector<32x32xf32>
    %c0_7 = arith.constant 0 : index
    %c0_8 = arith.constant 0 : index
    %32 = vector.load %arg5[%c0_7, %c0_8] : memref<32x1xf32, #tpu.memory_space<vmem>>, vector<32x1xf32>
    %cst_9 = arith.constant dense<0.000000e+00> : vector<32x512xf32>
    %33 = tpu.matmul %31, %30, %cst_9 {dimension_numbers = #tpu.dot_dimension_numbers<[1], [0], [0], [1], [0, 0, 1, 1], [], []>} : vector<32x32xf32>, vector<32x512xf32>, vector<32x512xf32> -> vector<32x512xf32>
    %34 = vector.broadcast %32 : vector<32x1xf32> to vector<32x512xf32>
    %35 = arith.addf %33, %34 : vector<32x512xf32>
    %cst_10 = arith.constant 0.000000e+00 : f32
    %36 = vector.broadcast %cst_10 : f32 to vector<32x512xf32>
    %37 = arith.maximumf %35, %36 : vector<32x512xf32>
    %c0_11 = arith.constant 0 : index
    %c0_12 = arith.constant 0 : index
    %38 = vector.load %arg6[%c0_11, %c0_12] : memref<4x32xf32, #tpu.memory_space<vmem>>, vector<4x32xf32>
    %c0_13 = arith.constant 0 : index
    %c0_14 = arith.constant 0 : index
    %39 = vector.load %arg7[%c0_13, %c0_14] : memref<4x1xf32, #tpu.memory_space<vmem>>, vector<4x1xf32>
    %cst_15 = arith.constant dense<0.000000e+00> : vector<4x512xf32>
    %40 = tpu.matmul %38, %37, %cst_15 {dimension_numbers = #tpu.dot_dimension_numbers<[1], [0], [0], [1], [0, 0, 1, 1], [], []>} : vector<4x32xf32>, vector<32x512xf32>, vector<4x512xf32> -> vector<4x512xf32>
    %41 = vector.broadcast %39 : vector<4x1xf32> to vector<4x512xf32>
    %42 = arith.addf %40, %41 : vector<4x512xf32>
    %c0_16 = arith.constant 0 : index
    %c0_17 = arith.constant 0 : index
    %43 = vector.load %arg8[%c0_16, %c0_17] : memref<4x512xf32, #tpu.memory_space<vmem>>, vector<4x512xf32>
    tpu.vector_store %arg8[%c0_16, %c0_17], %42 {strides = array<i32>} : memref<4x512xf32, #tpu.memory_space<vmem>>, vector<4x512xf32>,
    return
  }
  func.func @transform_0(%arg0: i32) -> (i32, i32) {
    %c0_i32 = arith.constant 0 : i32
    %c0_i32_0 = arith.constant 0 : i32
    return %c0_i32, %arg0 : i32, i32
  }
  func.func @transform_1(%arg0: i32) -> (i32, i32) {
    %c0_i32 = arith.constant 0 : i32
    %c0_i32_0 = arith.constant 0 : i32
    %c0_i32_1 = arith.constant 0 : i32
    return %c0_i32, %c0_i32_0 : i32, i32
  }
  func.func @transform_2(%arg0: i32) -> (i32, i32) {
    %c0_i32 = arith.constant 0 : i32
    %c0_i32_0 = arith.constant 0 : i32
    %c0_i32_1 = arith.constant 0 : i32
    return %c0_i32, %c0_i32_0 : i32, i32
  }
  func.func @transform_3(%arg0: i32) -> (i32, i32) {
    %c0_i32 = arith.constant 0 : i32
    %c0_i32_0 = arith.constant 0 : i32
    %c0_i32_1 = arith.constant 0 : i32
    return %c0_i32, %c0_i32_0 : i32, i32
  }
  func.func @transform_4(%arg0: i32) -> (i32, i32) {
    %c0_i32 = arith.constant 0 : i32
    %c0_i32_0 = arith.constant 0 : i32
    %c0_i32_1 = arith.constant 0 : i32
    return %c0_i32, %c0_i32_0 : i32, i32
  }
  func.func @transform_5(%arg0: i32) -> (i32, i32) {
    %c0_i32 = arith.constant 0 : i32
    %c0_i32_0 = arith.constant 0 : i32
    %c0_i32_1 = arith.constant 0 : i32
    return %c0_i32, %c0_i32_0 : i32, i32
  }
  func.func @transform_6(%arg0: i32) -> (i32, i32) {
    %c0_i32 = arith.constant 0 : i32
    %c0_i32_0 = arith.constant 0 : i32
    %c0_i32_1 = arith.constant 0 : i32
    return %c0_i32, %c0_i32_0 : i32, i32
  }
  func.func @transform_7(%arg0: i32) -> (i32, i32) {
    %c0_i32 = arith.constant 0 : i32
    %c0_i32_0 = arith.constant 0 : i32
    return %c0_i32, %arg0 : i32, i32
  }
}

</mosaic_0001>

<llo_original>
// kernel: tpu_custom_call.1
$region0: #{tpu_custom_call.1}
  #allocation0 [shape = 'u32[]', space=smem, size = 0x4, offset = 0x4, fixed_abs, tag = 'smem constant byte address 0x4 - core index']
  #allocation1 [shape = 'u32[72,128]{1,0:T(1,128)}', space=vmem, size = 0x9000, scoped, tag = 'internal scratch']
  %s0 = inlined_call_operand.vmem [shape: f32[4,1024], index: 0, kind: input, shape index: {}]
  %s1 = inlined_call_operand.vmem [shape: f32[32,4], index: 1, kind: input, shape index: {}]
  %s2 = inlined_call_operand.vmem [shape: f32[32,1], index: 2, kind: input, shape index: {}]
  %s3 = inlined_call_operand.vmem [shape: f32[32,32], index: 3, kind: input, shape index: {}]
  %s4 = inlined_call_operand.vmem [shape: f32[32,1], index: 4, kind: input, shape index: {}]
  %s5 = inlined_call_operand.vmem [shape: f32[4,32], index: 5, kind: input, shape index: {}]
  %s6 = inlined_call_operand.vmem [shape: f32[4,1], index: 6, kind: input, shape index: {}]
  %s7 = inlined_call_operand.hbm [shape: f32[4,1024], index: 7, kind: output, shape index: {}]
  %s8 = sld [smem:[#allocation0]]
  $region61: #{tpu_custom_call.1} parent=0
    _
  %s10 = ssub.s32 1, %s8
  %s11 = scalar_select 0, %s10, %s8
  $region1: #{tpu_custom_call.1} parent=0
    #allocation2 [shape = 'u8[16384]{0}', space=vmem, size = 0x4000, scoped, tag = 'output window, operand 0']
    #allocation3 [shape = 's32[2]{0}', space=sflag, size = 0x8, scoped, tag = 'scoped memory for tpu_custom_call.1']
    %12 = vsyncpa [#allocation3], 0
    %s13 = scalar_lea.sflag [#allocation3], 1
    %14 = vsyncpa %s13, 0
    loop: start=0, step=1, limit=4
    $region2: #{tpu_custom_call.1} parent=1 // loop_pre_header
      _
    $region3: #{tpu_custom_call.1} parent=1 // loop_header
      %s16 = sphi 0, %s20
      %p17 = scmp.ge.s32.totalorder %s16, 4
      %s26 = sphi 0, %s28
      %s29 = sphi 0, %s26
      %s30 = sphi 0, %s29
      %s46 = sphi 0, %s30
      %s50 = sphi 0, %s50
      %s52 = sphi 0, %s50
      %s53 = sphi 0, %s52
      %s67 = sphi 0, %s53
      %s71 = sphi 0, %s71
      %s73 = sphi 0, %s71
      %s74 = sphi 0, %s73
      %s88 = sphi 0, %s74
      %s92 = sphi 0, %s92
      %s94 = sphi 0, %s92
      %s95 = sphi 0, %s94
      %s109 = sphi 0, %s95
      %s113 = sphi 0, %s113
      %s115 = sphi 0, %s113
      %s116 = sphi 0, %s115
      %s130 = sphi 0, %s116
      %s134 = sphi 0, %s134
      %s136 = sphi 0, %s134
      %s137 = sphi 0, %s136
      %s151 = sphi 0, %s137
      %s155 = sphi 0, %s155
      %s157 = sphi 0, %s155
      %s158 = sphi 0, %s157
      %s172 = sphi 0, %s158
      %s178 = sphi 0, %s180
      %s181 = sphi 0, %s178
      %s182 = sphi 0, %s181
      %s198 = sphi 0, %s182
    $region4: #{tpu_custom_call.1} parent=1 // loop_header_branch
      %19 = sbr.rel (%p17) target = $region8
    $region5: #{tpu_custom_call.1} parent=1 // loop_body
      %s21 = ssub.s32 %s16, 1
      %s22 = ssub.s32 %s16, 2
      %s23 = sadd.s32 %s16, 1
      %s24 = ssub.s32 %s16, %s23
      %p25 = scmp.eq.s32.totalorder %s24, 0
      %s27 = sadd.s32 %s26, 1
      %s28 = scalar_select %p25, %s26, %s27
      %p31 = pneg %p25
      %p32 = scmp.eq.s32.totalorder %s16, 1
      %p33 = por %p31, %p32
      %p34 = scmp.ne.s32.totalorder %s26, %s29
      %p35 = scmp.eq.s32.totalorder %s16, 0
      %p36 = por %p34, %p35
      %p37 = scmp.ne.s32.totalorder %s26, %s29
      %p38 = scmp.eq.s32.totalorder %s21, 1
      %p39 = por %p37, %p38
      %p40 = scmp.ne.s32.totalorder %s29, %s30
      %p41 = scmp.eq.s32.totalorder %s21, 0
      %p42 = por %p40, %p41
      %p43 = scmp.ne.s32.totalorder %s29, %s30
      %p44 = scmp.eq.s32.totalorder %s22, 1
      %p45 = por %p43, %p44
      %p47 = scmp.ne.s32.totalorder %s30, %s46
      %p48 = scmp.eq.s32.totalorder %s22, 0
      %p49 = por %p47, %p48
      %s51 = sadd.s32 %s50, 1
      %p54 = scmp.eq.s32.totalorder %s16, 1
      %p55 = scmp.ne.s32.totalorder %s50, %s52
      %p56 = scmp.eq.s32.totalorder %s16, 0
      %p57 = por %p55, %p56
      %p58 = scmp.ne.s32.totalorder %s50, %s52
      %p59 = scmp.eq.s32.totalorder %s21, 1
      %p60 = por %p58, %p59
      %p61 = scmp.ne.s32.totalorder %s52, %s53
      %p62 = scmp.eq.s32.totalorder %s21, 0
      %p63 = por %p61, %p62
      %p64 = scmp.ne.s32.totalorder %s52, %s53
      %p65 = scmp.eq.s32.totalorder %s22, 1
      %p66 = por %p64, %p65
      %p68 = scmp.ne.s32.totalorder %s53, %s67
      %p69 = scmp.eq.s32.totalorder %s22, 0
      %p70 = por %p68, %p69
      %s72 = sadd.s32 %s71, 1
      %p75 = scmp.eq.s32.totalorder %s16, 1
      %p76 = scmp.ne.s32.totalorder %s71, %s73
      %p77 = scmp.eq.s32.totalorder %s16, 0
      %p78 = por %p76, %p77
      %p79 = scmp.ne.s32.totalorder %s71, %s73
      %p80 = scmp.eq.s32.totalorder %s21, 1
      %p81 = por %p79, %p80
      %p82 = scmp.ne.s32.totalorder %s73, %s74
      %p83 = scmp.eq.s32.totalorder %s21, 0
      %p84 = por %p82, %p83
      %p85 = scmp.ne.s32.totalorder %s73, %s74
      %p86 = scmp.eq.s32.totalorder %s22, 1
      %p87 = por %p85, %p86
      %p89 = scmp.ne.s32.totalorder %s74, %s88
      %p90 = scmp.eq.s32.totalorder %s22, 0
      %p91 = por %p89, %p90
      %s93 = sadd.s32 %s92, 1
      %p96 = scmp.eq.s32.totalorder %s16, 1
      %p97 = scmp.ne.s32.totalorder %s92, %s94
      %p98 = scmp.eq.s32.totalorder %s16, 0
      %p99 = por %p97, %p98
      %p100 = scmp.ne.s32.totalorder %s92, %s94
      %p101 = scmp.eq.s32.totalorder %s21, 1
      %p102 = por %p100, %p101
      %p103 = scmp.ne.s32.totalorder %s94, %s95
      %p104 = scmp.eq.s32.totalorder %s21, 0
      %p105 = por %p103, %p104
      %p106 = scmp.ne.s32.totalorder %s94, %s95
      %p107 = scmp.eq.s32.totalorder %s22, 1
      %p108 = por %p106, %p107
      %p110 = scmp.ne.s32.totalorder %s95, %s109
      %p111 = scmp.eq.s32.totalorder %s22, 0
      %p112 = por %p110, %p111
      %s114 = sadd.s32 %s113, 1
      %p117 = scmp.eq.s32.totalorder %s16, 1
      %p118 = scmp.ne.s32.totalorder %s113, %s115
      %p119 = scmp.eq.s32.totalorder %s16, 0
      %p120 = por %p118, %p119
      %p121 = scmp.ne.s32.totalorder %s113, %s115
      %p122 = scmp.eq.s32.totalorder %s21, 1
      %p123 = por %p121, %p122
      %p124 = scmp.ne.s32.totalorder %s115, %s116
      %p125 = scmp.eq.s32.totalorder %s21, 0
      %p126 = por %p124, %p125
      %p127 = scmp.ne.s32.totalorder %s115, %s116
      %p128 = scmp.eq.s32.totalorder %s22, 1
      %p129 = por %p127, %p128
      %p131 = scmp.ne.s32.totalorder %s116, %s130
      %p132 = scmp.eq.s32.totalorder %s22, 0
      %p133 = por %p131, %p132
      %s135 = sadd.s32 %s134, 1
      %p138 = scmp.eq.s32.totalorder %s16, 1
      %p139 = scmp.ne.s32.totalorder %s134, %s136
      %p140 = scmp.eq.s32.totalorder %s16, 0
      %p141 = por %p139, %p140
      %p142 = scmp.ne.s32.totalorder %s134, %s136
      %p143 = scmp.eq.s32.totalorder %s21, 1
      %p144 = por %p142, %p143
      %p145 = scmp.ne.s32.totalorder %s136, %s137
      %p146 = scmp.eq.s32.totalorder %s21, 0
      %p147 = por %p145, %p146
      %p148 = scmp.ne.s32.totalorder %s136, %s137
      %p149 = scmp.eq.s32.totalorder %s22, 1
      %p150 = por %p148, %p149
      %p152 = scmp.ne.s32.totalorder %s137, %s151
      %p153 = scmp.eq.s32.totalorder %s22, 0
      %p154 = por %p152, %p153
      %s156 = sadd.s32 %s155, 1
      %p159 = scmp.eq.s32.totalorder %s16, 1
      %p160 = scmp.ne.s32.totalorder %s155, %s157
      %p161 = scmp.eq.s32.totalorder %s16, 0
      %p162 = por %p160, %p161
      %p163 = scmp.ne.s32.totalorder %s155, %s157
      %p164 = scmp.eq.s32.totalorder %s21, 1
      %p165 = por %p163, %p164
      %p166 = scmp.ne.s32.totalorder %s157, %s158
      %p167 = scmp.eq.s32.totalorder %s21, 0
      %p168 = por %p166, %p167
      %p169 = scmp.ne.s32.totalorder %s157, %s158
      %p170 = scmp.eq.s32.totalorder %s22, 1
      %p171 = por %p169, %p170
      %p173 = scmp.ne.s32.totalorder %s158, %s172
      %p174 = scmp.eq.s32.totalorder %s22, 0
      %p175 = por %p173, %p174
      %s176 = ssub.s32 %s16, %s23
      %p177 = scmp.eq.s32.totalorder %s176, 0
      %s179 = sadd.s32 %s178, 1
      %s180 = scalar_select %p177, %s178, %s179
      %p183 = pneg %p177
      %p184 = scmp.eq.s32.totalorder %s16, 1
      %p185 = por %p183, %p184
      %p186 = scmp.ne.s32.totalorder %s178, %s181
      %p187 = scmp.eq.s32.totalorder %s16, 0
      %p188 = por %p186, %p187
      %p189 = scmp.ne.s32.totalorder %s178, %s181
      %p190 = scmp.eq.s32.totalorder %s21, 1
      %p191 = por %p189, %p190
      %p192 = scmp.ne.s32.totalorder %s181, %s182
      %p193 = scmp.eq.s32.totalorder %s21, 0
      %p194 = por %p192, %p193
      %p195 = scmp.ne.s32.totalorder %s181, %s182
      %p196 = scmp.eq.s32.totalorder %s22, 1
      %p197 = por %p195, %p196
      %p199 = scmp.ne.s32.totalorder %s182, %s198
      %p200 = scmp.eq.s32.totalorder %s22, 0
      %p201 = por %p199, %p200
      %p202 = scmp.le.s32.totalorder 1, %s16
      %p203 = scmp.lt.s32.totalorder %s16, 3
      %p204 = pnand %p202, %p203
      %p205 = pneg %p204
      // Predicated region
      $region9: #{tpu_custom_call.1} parent=5 // pred_check
        _
      $region10: #{tpu_custom_call.1} parent=5 // pred_check_branch
        %207 = sbr.rel (%p204) target = $region12
      $region11: #{tpu_custom_call.1} parent=5 // pred_region
        %s208 = ssub.s32 %s16, 1
        // Predicated region
        $region13: #{tpu_custom_call.1} parent=11 // pred_check
          %p209 = pneg %p63
        $region14: #{tpu_custom_call.1} parent=11 // pred_check_branch
          %211 = sbr.rel (%p209) target = $region16
        $region15: #{tpu_custom_call.1} parent=11 // pred_region
          _
        $region16: #{tpu_custom_call.1} parent=11 // pred_fallthru
          _
        // Predicated region
        $region17: #{tpu_custom_call.1} parent=11 // pred_check
          %p212 = pneg %p84
        $region18: #{tpu_custom_call.1} parent=11 // pred_check_branch
          %214 = sbr.rel (%p212) target = $region20
        $region19: #{tpu_custom_call.1} parent=11 // pred_region
          _
        $region20: #{tpu_custom_call.1} parent=11 // pred_fallthru
          _
        // Predicated region
        $region21: #{tpu_custom_call.1} parent=11 // pred_check
          %p215 = pneg %p105
        $region22: #{tpu_custom_call.1} parent=11 // pred_check_branch
          %217 = sbr.rel (%p215) target = $region24
        $region23: #{tpu_custom_call.1} parent=11 // pred_region
          _
        $region24: #{tpu_custom_call.1} parent=11 // pred_fallthru
          _
        // Predicated region
        $region25: #{tpu_custom_call.1} parent=11 // pred_check
          %p218 = pneg %p126
        $region26: #{tpu_custom_call.1} parent=11 // pred_check_branch
          %220 = sbr.rel (%p218) target = $region28
        $region27: #{tpu_custom_call.1} parent=11 // pred_region
          _
        $region28: #{tpu_custom_call.1} parent=11 // pred_fallthru
          _
        // Predicated region
        $region29: #{tpu_custom_call.1} parent=11 // pred_check
          %p221 = pneg %p147
        $region30: #{tpu_custom_call.1} parent=11 // pred_check_branch
          %223 = sbr.rel (%p221) target = $region32
        $region31: #{tpu_custom_call.1} parent=11 // pred_region
          _
        $region32: #{tpu_custom_call.1} parent=11 // pred_fallthru
          _
        // Predicated region
        $region33: #{tpu_custom_call.1} parent=11 // pred_check
          %p224 = pneg %p168
        $region34: #{tpu_custom_call.1} parent=11 // pred_check_branch
          %226 = sbr.rel (%p224) target = $region36
        $region35: #{tpu_custom_call.1} parent=11 // pred_region
          _
        $region36: #{tpu_custom_call.1} parent=11 // pred_fallthru
          _
      $region12: #{tpu_custom_call.1} parent=5 // pred_fallthru
        _
      %p227 = scmp.lt.s32.totalorder %s16, 2
      // Predicated region
      $region37: #{tpu_custom_call.1} parent=5 // pred_check
        %p228 = pneg %p227
      $region38: #{tpu_custom_call.1} parent=5 // pred_check_branch
        %230 = sbr.rel (%p228) target = $region40
      $region39: #{tpu_custom_call.1} parent=5 // pred_region
        // Predicated region
        $region41: #{tpu_custom_call.1} parent=39 // pred_check
          %p231 = pneg %p36
        $region42: #{tpu_custom_call.1} parent=39 // pred_check_branch
          %233 = sbr.rel (%p231) target = $region44
        $region43: #{tpu_custom_call.1} parent=39 // pred_region
          %s234 = smul.u32 4, %s16
          %p235 = scmp.lt.s32.totalorder %s234, 7
          %s236 = scalar_select %p235, %s234, 7
          %s237 = smul.addr %s236, 4
          %s238 = scalar_lea.vmem %s0, %s237
          %s239 = smul.u32 4, %s16
        $region44: #{tpu_custom_call.1} parent=39 // pred_fallthru
          _
      $region40: #{tpu_custom_call.1} parent=5 // pred_fallthru
        _
      %p240 = scmp.le.s32.totalorder 1, %s16
      %p241 = scmp.lt.s32.totalorder %s16, 3
      %p242 = pnand %p240, %p241
      %p243 = pneg %p242
      // Predicated region
      $region45: #{tpu_custom_call.1} parent=5 // pred_check
        _
      $region46: #{tpu_custom_call.1} parent=5 // pred_check_branch
        %245 = sbr.rel (%p242) target = $region48
      $region47: #{tpu_custom_call.1} parent=5 // pred_region
        %s246 = ssub.s32 %s16, 1
        %s247 = smul.u32 4, %s21
        %p248 = scmp.lt.s32.totalorder %s247, 7
        %s249 = scalar_select %p248, %s247, 7
        %s250 = smul.addr %s249, 4
        %s251 = scalar_lea.vmem %s0, %s250
        %p252 = pneg %p42
        %p253 = pneg %p39
        %p254 = pneg %p63
        %p255 = pneg %p60
        %p256 = pneg %p84
        %p257 = pneg %p81
        %p258 = pneg %p105
        %p259 = pneg %p102
        %p260 = pneg %p126
        %p261 = pneg %p123
        %p262 = pneg %p147
        %p263 = pneg %p144
        %p264 = pneg %p168
        %p265 = pneg %p165
        %p266 = pneg %p194
        %p267 = pneg %p191
        %s268 = sand.u32 %s181, 1
        %s269 = scalar_lea.sflag [#allocation3], %s268
        %s270 = sand.u32 %s181, 1
        %s271 = smul.addr %s270, 16
        %s272 = scalar_lea.vmem [#allocation2], %s271
        %s273 = smul.u32 4, %s21
        %p274 = scmp.lt.s32.totalorder %s273, 7
        %s275 = scalar_select %p274, %s273, 7
        %s276 = smul.addr %s275, 4
        %s277 = scalar_lea.vmem %s0, %s276
        %s278 = smul.u32 4, %s21
        %s279 = smul.u32 4, %s21
        %v280 = vld [vmem:[%s277] sm:$0xff]
        %v281 = vld [vmem:[%s277 + $0x8] sm:$0xff]
        %v282 = vld [vmem:[%s1] sm:$0xff]
        %v283 = vld [vmem:[%s1 + $0x8] sm:$0xff]
        %v284 = vld [vmem:[%s1 + $0x10] sm:$0xff]
        %v285 = vld [vmem:[%s1 + $0x18] sm:$0xff]
        %v286 = vld [vmem:[%s2] sm:$0xff]
        %v287 = vld [vmem:[%s2 + $0x8] sm:$0xff]
        %v288 = vld [vmem:[%s2 + $0x10] sm:$0xff]
        %v289 = vld [vmem:[%s2 + $0x18] sm:$0xff]
        %291 = vset.pattern.permute.xlu0 0
        %292 = vperm.xlu0 %291, %v286
        %v293 = vpop.permute.xlu0 %292
        %296 = vset.pattern.permute.xlu0 0
        %297 = vperm.xlu0 %296, %v287
        %v298 = vpop.permute.xlu0 %297
        %301 = vset.pattern.permute.xlu0 0
        %302 = vperm.xlu0 %301, %v288
        %v303 = vpop.permute.xlu0 %302
        %306 = vset.pattern.permute.xlu0 0
        %307 = vperm.xlu0 %306, %v289
        %v308 = vpop.permute.xlu0 %307
        %311 = vset.pattern.permute.xlu0 0
        %312 = vperm.xlu0 %311, %v282
        %v313 = vpop.permute.xlu0 %312
        %316 = vset.pattern.permute.xlu0 0
        %317 = vperm.xlu0 %316, %v283
        %v318 = vpop.permute.xlu0 %317
        %321 = vset.pattern.permute.xlu0 0
        %322 = vperm.xlu0 %321, %v284
        %v323 = vpop.permute.xlu0 %322
        %326 = vset.pattern.permute.xlu0 0
        %327 = vperm.xlu0 %326, %v285
        %v328 = vpop.permute.xlu0 %327
        %v332 = vperm.slane %v280, 0
        %v333 = vperm.slane %v280, 4
        %v334 = vperm.slane %v281, 0
        %v335 = vperm.slane %v281, 4
        %v340 = vperm.slane %v332, 0
        %v341 = vperm.slane %v333, 0
        %v342 = vperm.slane %v334, 0
        %v343 = vperm.slane %v335, 0
        %v344 = vmul.f32 %v313, %v340
        %v345 = vmul.f32 %v313, %v341
        %v346 = vmul.f32 %v313, %v342
        %v347 = vmul.f32 %v313, %v343
        %v348 = vmul.f32 %v318, %v340
        %v349 = vmul.f32 %v318, %v341
        %v350 = vmul.f32 %v318, %v342
        %v351 = vmul.f32 %v318, %v343
        %v352 = vmul.f32 %v323, %v340
        %v353 = vmul.f32 %v323, %v341
        %v354 = vmul.f32 %v323, %v342
        %v355 = vmul.f32 %v323, %v343
        %v356 = vmul.f32 %v328, %v340
        %v357 = vmul.f32 %v328, %v341
        %v358 = vmul.f32 %v328, %v342
        %v359 = vmul.f32 %v328, %v343
        %v360 = vadd.f32 %v293, %v344
        %v361 = vadd.f32 %v293, %v345
        %v362 = vadd.f32 %v293, %v346
        %v363 = vadd.f32 %v293, %v347
        %v364 = vadd.f32 %v298, %v348
        %v365 = vadd.f32 %v298, %v349
        %v366 = vadd.f32 %v298, %v350
        %v367 = vadd.f32 %v298, %v351
        %v368 = vadd.f32 %v303, %v352
        %v369 = vadd.f32 %v303, %v353
        %v370 = vadd.f32 %v303, %v354
        %v371 = vadd.f32 %v303, %v355
        %v372 = vadd.f32 %v308, %v356
        %v373 = vadd.f32 %v308, %v357
        %v374 = vadd.f32 %v308, %v358
        %v375 = vadd.f32 %v308, %v359
        %376 = vset.pattern.permute.xlu0 1
        %377 = vperm.xlu0 %376, %v282
        %v378 = vpop.permute.xlu0 %377
        %380 = vset.pattern.permute.xlu0 1
        %381 = vperm.xlu0 %380, %v283
        %v382 = vpop.permute.xlu0 %381
        %384 = vset.pattern.permute.xlu0 1
        %385 = vperm.xlu0 %384, %v284
        %v386 = vpop.permute.xlu0 %385
        %388 = vset.pattern.permute.xlu0 1
        %389 = vperm.xlu0 %388, %v285
        %v390 = vpop.permute.xlu0 %389
        %v392 = vperm.slane %v280, 1
        %v393 = vperm.slane %v280, 5
        %v394 = vperm.slane %v281, 1
        %v395 = vperm.slane %v281, 5
        %v400 = vperm.slane %v392, 1
        %v401 = vperm.slane %v393, 1
        %v402 = vperm.slane %v394, 1
        %v403 = vperm.slane %v395, 1
        %v404 = vmul.f32 %v378, %v400
        %v405 = vmul.f32 %v378, %v401
        %v406 = vmul.f32 %v378, %v402
        %v407 = vmul.f32 %v378, %v403
        %v408 = vmul.f32 %v382, %v400
        %v409 = vmul.f32 %v382, %v401
        %v410 = vmul.f32 %v382, %v402
        %v411 = vmul.f32 %v382, %v403
        %v412 = vmul.f32 %v386, %v400
        %v413 = vmul.f32 %v386, %v401
        %v414 = vmul.f32 %v386, %v402
        %v415 = vmul.f32 %v386, %v403
        %v416 = vmul.f32 %v390, %v400
        %v417 = vmul.f32 %v390, %v401
        %v418 = vmul.f32 %v390, %v402
        %v419 = vmul.f32 %v390, %v403
        %v420 = vadd.f32 %v360, %v404
        %v421 = vadd.f32 %v361, %v405
        %v422 = vadd.f32 %v362, %v406
        %v423 = vadd.f32 %v363, %v407
        %v424 = vadd.f32 %v364, %v408
        %v425 = vadd.f32 %v365, %v409
        %v426 = vadd.f32 %v366, %v410
        %v427 = vadd.f32 %v367, %v411
        %v428 = vadd.f32 %v368, %v412
        %v429 = vadd.f32 %v369, %v413
        %v430 = vadd.f32 %v370, %v414
        %v431 = vadd.f32 %v371, %v415
        %v432 = vadd.f32 %v372, %v416
        %v433 = vadd.f32 %v373, %v417
        %v434 = vadd.f32 %v374, %v418
        %v435 = vadd.f32 %v375, %v419
        %436 = vset.pattern.permute.xlu0 2
        %437 = vperm.xlu0 %436, %v282
        %v438 = vpop.permute.xlu0 %437
        %440 = vset.pattern.permute.xlu0 2
        %441 = vperm.xlu0 %440, %v283
        %v442 = vpop.permute.xlu0 %441
        %444 = vset.pattern.permute.xlu0 2
        %445 = vperm.xlu0 %444, %v284
        %v446 = vpop.permute.xlu0 %445
        %448 = vset.pattern.permute.xlu0 2
        %449 = vperm.xlu0 %448, %v285
        %v450 = vpop.permute.xlu0 %449
        %v452 = vperm.slane %v280, 2
        %v453 = vperm.slane %v280, 6
        %v454 = vperm.slane %v281, 2
        %v455 = vperm.slane %v281, 6
        %v460 = vperm.slane %v452, 2
        %v461 = vperm.slane %v453, 2
        %v462 = vperm.slane %v454, 2
        %v463 = vperm.slane %v455, 2
        %v464 = vmul.f32 %v438, %v460
        %v465 = vmul.f32 %v438, %v461
        %v466 = vmul.f32 %v438, %v462
        %v467 = vmul.f32 %v438, %v463
        %v468 = vmul.f32 %v442, %v460
        %v469 = vmul.f32 %v442, %v461
        %v470 = vmul.f32 %v442, %v462
        %v471 = vmul.f32 %v442, %v463
        %v472 = vmul.f32 %v446, %v460
        %v473 = vmul.f32 %v446, %v461
        %v474 = vmul.f32 %v446, %v462
        %v475 = vmul.f32 %v446, %v463
        %v476 = vmul.f32 %v450, %v460
        %v477 = vmul.f32 %v450, %v461
        %v478 = vmul.f32 %v450, %v462
        %v479 = vmul.f32 %v450, %v463
        %v480 = vadd.f32 %v420, %v464
        %v481 = vadd.f32 %v421, %v465
        %v482 = vadd.f32 %v422, %v466
        %v483 = vadd.f32 %v423, %v467
        %v484 = vadd.f32 %v424, %v468
        %v485 = vadd.f32 %v425, %v469
        %v486 = vadd.f32 %v426, %v470
        %v487 = vadd.f32 %v427, %v471
        %v488 = vadd.f32 %v428, %v472
        %v489 = vadd.f32 %v429, %v473
        %v490 = vadd.f32 %v430, %v474
        %v491 = vadd.f32 %v431, %v475
        %v492 = vadd.f32 %v432, %v476
        %v493 = vadd.f32 %v433, %v477
        %v494 = vadd.f32 %v434, %v478
        %v495 = vadd.f32 %v435, %v479
        %496 = vset.pattern.permute.xlu0 3
        %497 = vperm.xlu0 %496, %v282
        %v498 = vpop.permute.xlu0 %497
        %500 = vset.pattern.permute.xlu0 3
        %501 = vperm.xlu0 %500, %v283
        %v502 = vpop.permute.xlu0 %501
        %504 = vset.pattern.permute.xlu0 3
        %505 = vperm.xlu0 %504, %v284
        %v506 = vpop.permute.xlu0 %505
        %508 = vset.pattern.permute.xlu0 3
        %509 = vperm.xlu0 %508, %v285
        %v510 = vpop.permute.xlu0 %509
        %v512 = vperm.slane %v280, 3
        %v513 = vperm.slane %v280, 7
        %v514 = vperm.slane %v281, 3
        %v515 = vperm.slane %v281, 7
        %v520 = vperm.slane %v512, 3
        %v521 = vperm.slane %v513, 3
        %v522 = vperm.slane %v514, 3
        %v523 = vperm.slane %v515, 3
        %v524 = vmul.f32 %v498, %v520
        %v525 = vmul.f32 %v498, %v521
        %v526 = vmul.f32 %v498, %v522
        %v527 = vmul.f32 %v498, %v523
        %v528 = vmul.f32 %v502, %v520
        %v529 = vmul.f32 %v502, %v521
        %v530 = vmul.f32 %v502, %v522
        %v531 = vmul.f32 %v502, %v523
        %v532 = vmul.f32 %v506, %v520
        %v533 = vmul.f32 %v506, %v521
        %v534 = vmul.f32 %v506, %v522
        %v535 = vmul.f32 %v506, %v523
        %v536 = vmul.f32 %v510, %v520
        %v537 = vmul.f32 %v510, %v521
        %v538 = vmul.f32 %v510, %v522
        %v539 = vmul.f32 %v510, %v523
        %v540 = vadd.f32 %v480, %v524
        %v541 = vadd.f32 %v481, %v525
        %v542 = vadd.f32 %v482, %v526
        %v543 = vadd.f32 %v483, %v527
        %v544 = vadd.f32 %v484, %v528
        %v545 = vadd.f32 %v485, %v529
        %v546 = vadd.f32 %v486, %v530
        %v547 = vadd.f32 %v487, %v531
        %v548 = vadd.f32 %v488, %v532
        %v549 = vadd.f32 %v489, %v533
        %v550 = vadd.f32 %v490, %v534
        %v551 = vadd.f32 %v491, %v535
        %v552 = vadd.f32 %v492, %v536
        %v553 = vadd.f32 %v493, %v537
        %v554 = vadd.f32 %v494, %v538
        %v555 = vadd.f32 %v495, %v539
        %v556 = vmax.f32 %v540, 0.0
        %v557 = vmax.f32 %v541, 0.0
        %v558 = vmax.f32 %v542, 0.0
        %v559 = vmax.f32 %v543, 0.0
        %v560 = vmax.f32 %v544, 0.0
        %v561 = vmax.f32 %v545, 0.0
        %v562 = vmax.f32 %v546, 0.0
        %v563 = vmax.f32 %v547, 0.0
        %v564 = vmax.f32 %v548, 0.0
        %v565 = vmax.f32 %v549, 0.0
        %v566 = vmax.f32 %v550, 0.0
        %v567 = vmax.f32 %v551, 0.0
        %v568 = vmax.f32 %v552, 0.0
        %v569 = vmax.f32 %v553, 0.0
        %v570 = vmax.f32 %v554, 0.0
        %v571 = vmax.f32 %v555, 0.0
        %v572 = vld [vmem:[%s3] sm:$0xff]
        %v573 = vld [vmem:[%s3 + $0x8] sm:$0xff]
        %v574 = vld [vmem:[%s3 + $0x10] sm:$0xff]
        %v575 = vld [vmem:[%s3 + $0x18] sm:$0xff]
        %v576 = vld [vmem:[%s4] sm:$0xff]
        %v577 = vld [vmem:[%s4 + $0x8] sm:$0xff]
        %v578 = vld [vmem:[%s4 + $0x10] sm:$0xff]
        %v579 = vld [vmem:[%s4 + $0x18] sm:$0xff]
        %581 = vset.pattern.permute.xlu0 0
        %582 = vperm.xlu0 %581, %v576
        %v583 = vpop.permute.xlu0 %582
        %586 = vset.pattern.permute.xlu0 0
        %587 = vperm.xlu0 %586, %v577
        %v588 = vpop.permute.xlu0 %587
        %591 = vset.pattern.permute.xlu0 0
        %592 = vperm.xlu0 %591, %v578
        %v593 = vpop.permute.xlu0 %592
        %596 = vset.pattern.permute.xlu0 0
        %597 = vperm.xlu0 %596, %v579
        %v598 = vpop.permute.xlu0 %597
        %vm600 = vcmask 261120
        %v602 = vsel %vm600, %v572, 0
        %v605 = vsel %vm600, %v573, 0
        %v608 = vsel %vm600, %v574, 0
        %v611 = vsel %vm600, %v575, 0
        %613 = vmatpush.msra.mxu0 0.0
        %614 = vmatpush.msra.mxu0 0.0
        %615 = vmatpush.msra.mxu0 0.0
        %616 = vmatpush.msra.mxu0 0.0
        %617 = vmatpush.msra.mxu0 0.0
        %618 = vmatpush.msra.mxu0 0.0
        %619 = vmatpush.msra.mxu0 0.0
        %620 = vmatpush.msra.mxu0 0.0
        %621 = vmatpush.msra.mxu0 0.0
        %622 = vmatpush.msra.mxu0 0.0
        %623 = vmatpush.msra.mxu0 0.0
        %624 = vmatpush.msra.mxu0 0.0
        %625 = vmatpush.msra.mxu0 %v568
        %626 = vmatpush.msra.mxu0 %v564
        %627 = vmatpush.msra.mxu0 %v560
        %628 = vmatpush.msra.mxu0 %v556
        %629 = vmatmul.f32.gmra.mxu0 %v602
        %v630 = vpop.f32.mrf.mxu0
        %v631 = vadd.f32 %v583, %v630
        %632 = vmatmul.f32.gmra.mxu0 %v605
        %v633 = vpop.f32.mrf.mxu0
        %v634 = vadd.f32 %v588, %v633
        %635 = vmatmul.f32.gmra.mxu0 %v608
        %v636 = vpop.f32.mrf.mxu0
        %v637 = vadd.f32 %v593, %v636
        %638 = vmatmul.f32.gmra.mxu0 %v611
        %v639 = vpop.f32.mrf.mxu0
        %v640 = vadd.f32 %v598, %v639
        %641 = vdwg.mxu0
        %642 = vmatpush.msra.mxu0 0.0
        %643 = vmatpush.msra.mxu0 0.0
        %644 = vmatpush.msra.mxu0 0.0
        %645 = vmatpush.msra.mxu0 0.0
        %646 = vmatpush.msra.mxu0 0.0
        %647 = vmatpush.msra.mxu0 0.0
        %648 = vmatpush.msra.mxu0 0.0
        %649 = vmatpush.msra.mxu0 0.0
        %650 = vmatpush.msra.mxu0 0.0
        %651 = vmatpush.msra.mxu0 0.0
        %652 = vmatpush.msra.mxu0 0.0
        %653 = vmatpush.msra.mxu0 0.0
        %654 = vmatpush.msra.mxu0 %v569
        %655 = vmatpush.msra.mxu0 %v565
        %656 = vmatpush.msra.mxu0 %v561
        %657 = vmatpush.msra.mxu0 %v557
        %658 = vmatmul.f32.gmra.mxu0 %v602
        %v659 = vpop.f32.mrf.mxu0
        %v660 = vadd.f32 %v583, %v659
        %661 = vmatmul.f32.gmra.mxu0 %v605
        %v662 = vpop.f32.mrf.mxu0
        %v663 = vadd.f32 %v588, %v662
        %664 = vmatmul.f32.gmra.mxu0 %v608
        %v665 = vpop.f32.mrf.mxu0
        %v666 = vadd.f32 %v593, %v665
        %667 = vmatmul.f32.gmra.mxu0 %v611
        %v668 = vpop.f32.mrf.mxu0
        %v669 = vadd.f32 %v598, %v668
        %670 = vdwg.mxu0
        %671 = vmatpush.msra.mxu0 0.0
        %672 = vmatpush.msra.mxu0 0.0
        %673 = vmatpush.msra.mxu0 0.0
        %674 = vmatpush.msra.mxu0 0.0
        %675 = vmatpush.msra.mxu0 0.0
        %676 = vmatpush.msra.mxu0 0.0
        %677 = vmatpush.msra.mxu0 0.0
        %678 = vmatpush.msra.mxu0 0.0
        %679 = vmatpush.msra.mxu0 0.0
        %680 = vmatpush.msra.mxu0 0.0
        %681 = vmatpush.msra.mxu0 0.0
        %682 = vmatpush.msra.mxu0 0.0
        %683 = vmatpush.msra.mxu0 %v570
        %684 = vmatpush.msra.mxu0 %v566
        %685 = vmatpush.msra.mxu0 %v562
        %686 = vmatpush.msra.mxu0 %v558
        %687 = vmatmul.f32.gmra.mxu0 %v602
        %v688 = vpop.f32.mrf.mxu0
        %v689 = vadd.f32 %v583, %v688
        %690 = vmatmul.f32.gmra.mxu0 %v605
        %v691 = vpop.f32.mrf.mxu0
        %v692 = vadd.f32 %v588, %v691
        %693 = vmatmul.f32.gmra.mxu0 %v608
        %v694 = vpop.f32.mrf.mxu0
        %v695 = vadd.f32 %v593, %v694
        %696 = vmatmul.f32.gmra.mxu0 %v611
        %v697 = vpop.f32.mrf.mxu0
        %v698 = vadd.f32 %v598, %v697
        %699 = vdwg.mxu0
        %700 = vmatpush.msra.mxu0 0.0
        %701 = vmatpush.msra.mxu0 0.0
        %702 = vmatpush.msra.mxu0 0.0
        %703 = vmatpush.msra.mxu0 0.0
        %704 = vmatpush.msra.mxu0 0.0
        %705 = vmatpush.msra.mxu0 0.0
        %706 = vmatpush.msra.mxu0 0.0
        %707 = vmatpush.msra.mxu0 0.0
        %708 = vmatpush.msra.mxu0 0.0
        %709 = vmatpush.msra.mxu0 0.0
        %710 = vmatpush.msra.mxu0 0.0
        %711 = vmatpush.msra.mxu0 0.0
        %712 = vmatpush.msra.mxu0 %v571
        %713 = vmatpush.msra.mxu0 %v567
        %714 = vmatpush.msra.mxu0 %v563
        %715 = vmatpush.msra.mxu0 %v559
        %716 = vmatmul.f32.gmra.mxu0 %v602
        %v717 = vpop.f32.mrf.mxu0
        %v718 = vadd.f32 %v583, %v717
        %719 = vmatmul.f32.gmra.mxu0 %v605
        %v720 = vpop.f32.mrf.mxu0
        %v721 = vadd.f32 %v588, %v720
        %722 = vmatmul.f32.gmra.mxu0 %v608
        %v723 = vpop.f32.mrf.mxu0
        %v724 = vadd.f32 %v593, %v723
        %725 = vmatmul.f32.gmra.mxu0 %v611
        %v726 = vpop.f32.mrf.mxu0
        %v727 = vadd.f32 %v598, %v726
        %728 = vdwg.mxu0
        %v729 = vmax.f32 %v631, 0.0
        %v730 = vmax.f32 %v660, 0.0
        %v731 = vmax.f32 %v689, 0.0
        %v732 = vmax.f32 %v718, 0.0
        %v733 = vmax.f32 %v634, 0.0
        %v734 = vmax.f32 %v663, 0.0
        %v735 = vmax.f32 %v692, 0.0
        %v736 = vmax.f32 %v721, 0.0
        %v737 = vmax.f32 %v637, 0.0
        %v738 = vmax.f32 %v666, 0.0
        %v739 = vmax.f32 %v695, 0.0
        %v740 = vmax.f32 %v724, 0.0
        %v741 = vmax.f32 %v640, 0.0
        %v742 = vmax.f32 %v669, 0.0
        %v743 = vmax.f32 %v698, 0.0
        %v744 = vmax.f32 %v727, 0.0
        %v745 = vld [vmem:[%s5] sm:$0xf]
        %v746 = vld [vmem:[%s6] sm:$0xf]
        %748 = vset.pattern.permute.xlu0 0
        %749 = vperm.xlu0 %748, %v746
        %v750 = vpop.permute.xlu0 %749
        %v753 = vsel %vm600, %v745, 0
        %755 = vmatpush.msra.mxu0 0.0
        %756 = vmatpush.msra.mxu0 0.0
        %757 = vmatpush.msra.mxu0 0.0
        %758 = vmatpush.msra.mxu0 0.0
        %759 = vmatpush.msra.mxu0 0.0
        %760 = vmatpush.msra.mxu0 0.0
        %761 = vmatpush.msra.mxu0 0.0
        %762 = vmatpush.msra.mxu0 0.0
        %763 = vmatpush.msra.mxu0 0.0
        %764 = vmatpush.msra.mxu0 0.0
        %765 = vmatpush.msra.mxu0 0.0
        %766 = vmatpush.msra.mxu0 0.0
        %767 = vmatpush.msra.mxu0 %v741
        %768 = vmatpush.msra.mxu0 %v737
        %769 = vmatpush.msra.mxu0 %v733
        %770 = vmatpush.msra.mxu0 %v729
        %771 = vmatmul.f32.gmra.mxu0 %v753
        %v772 = vpop.f32.mrf.mxu0
        %v773 = vadd.f32 %v750, %v772
        %774 = vdwg.mxu0
        %775 = vmatpush.msra.mxu0 0.0
        %776 = vmatpush.msra.mxu0 0.0
        %777 = vmatpush.msra.mxu0 0.0
        %778 = vmatpush.msra.mxu0 0.0
        %779 = vmatpush.msra.mxu0 0.0
        %780 = vmatpush.msra.mxu0 0.0
        %781 = vmatpush.msra.mxu0 0.0
        %782 = vmatpush.msra.mxu0 0.0
        %783 = vmatpush.msra.mxu0 0.0
        %784 = vmatpush.msra.mxu0 0.0
        %785 = vmatpush.msra.mxu0 0.0
        %786 = vmatpush.msra.mxu0 0.0
        %787 = vmatpush.msra.mxu0 %v742
        %788 = vmatpush.msra.mxu0 %v738
        %789 = vmatpush.msra.mxu0 %v734
        %790 = vmatpush.msra.mxu0 %v730
        %791 = vmatmul.f32.gmra.mxu0 %v753
        %v792 = vpop.f32.mrf.mxu0
        %v793 = vadd.f32 %v750, %v792
        %794 = vdwg.mxu0
        %795 = vmatpush.msra.mxu0 0.0
        %796 = vmatpush.msra.mxu0 0.0
        %797 = vmatpush.msra.mxu0 0.0
        %798 = vmatpush.msra.mxu0 0.0
        %799 = vmatpush.msra.mxu0 0.0
        %800 = vmatpush.msra.mxu0 0.0
        %801 = vmatpush.msra.mxu0 0.0
        %802 = vmatpush.msra.mxu0 0.0
        %803 = vmatpush.msra.mxu0 0.0
        %804 = vmatpush.msra.mxu0 0.0
        %805 = vmatpush.msra.mxu0 0.0
        %806 = vmatpush.msra.mxu0 0.0
        %807 = vmatpush.msra.mxu0 %v743
        %808 = vmatpush.msra.mxu0 %v739
        %809 = vmatpush.msra.mxu0 %v735
        %810 = vmatpush.msra.mxu0 %v731
        %811 = vmatmul.f32.gmra.mxu0 %v753
        %v812 = vpop.f32.mrf.mxu0
        %v813 = vadd.f32 %v750, %v812
        %814 = vdwg.mxu0
        %815 = vmatpush.msra.mxu0 0.0
        %816 = vmatpush.msra.mxu0 0.0
        %817 = vmatpush.msra.mxu0 0.0
        %818 = vmatpush.msra.mxu0 0.0
        %819 = vmatpush.msra.mxu0 0.0
        %820 = vmatpush.msra.mxu0 0.0
        %821 = vmatpush.msra.mxu0 0.0
        %822 = vmatpush.msra.mxu0 0.0
        %823 = vmatpush.msra.mxu0 0.0
        %824 = vmatpush.msra.mxu0 0.0
        %825 = vmatpush.msra.mxu0 0.0
        %826 = vmatpush.msra.mxu0 0.0
        %827 = vmatpush.msra.mxu0 %v744
        %828 = vmatpush.msra.mxu0 %v740
        %829 = vmatpush.msra.mxu0 %v736
        %830 = vmatpush.msra.mxu0 %v732
        %831 = vmatmul.f32.gmra.mxu0 %v753
        %v832 = vpop.f32.mrf.mxu0
        %v833 = vadd.f32 %v750, %v832
        %834 = vdwg.mxu0
        %v839 = vrot.slane %v793, 4
        %v840 = vrot.slane %v833, 4
        %vm841 = vcmask 1043456
        %v842 = vsel %vm841, %v773, %v839
        %v843 = vsel %vm841, %v813, %v840
        %846 = vst [vmem:[%s272] sm:$0xff] %v842
        %847 = vst [vmem:[%s272 + $0x8] sm:$0xff] %v843
        %s848 = sand.u32 %s181, 1
        %s849 = scalar_lea.sflag [#allocation3], %s848
        %s850 = sand.u32 %s181, 1
        %s851 = smul.addr %s850, 16
        %s852 = scalar_lea.vmem [#allocation2], %s851
        // Predicated region
        $region49: #{tpu_custom_call.1} parent=47 // pred_check
          %p853 = pneg %p191
        $region50: #{tpu_custom_call.1} parent=47 // pred_check_branch
          %855 = sbr.rel (%p853) target = $region52
        $region51: #{tpu_custom_call.1} parent=47 // pred_region
          %s856 = smul.u32 4, %s21
          %858 = vsyncadd %s849, 0
          %s859 = smul.addr %s856, 4
          %s860 = scalar_lea.hbm %s7, %s859
          %s862 = sshll.u32 %s852, 4
          %s863 = int_to_ptr.vmem [resolvable:$true] %s862
          %s864 = sshll.u32 %s860, 4
          %s865 = int_to_ptr.hbm [resolvable:$true] %s864
          %867 = dma.vmem_to_hbm [thread:$0]  %s863, 256, %s865, %s849
        $region52: #{tpu_custom_call.1} parent=47 // pred_fallthru
          _
      $region48: #{tpu_custom_call.1} parent=5 // pred_fallthru
        _
      %p868 = scmp.le.s32.totalorder 2, %s16
      // Predicated region
      $region53: #{tpu_custom_call.1} parent=5 // pred_check
        %p869 = pneg %p868
      $region54: #{tpu_custom_call.1} parent=5 // pred_check_branch
        %871 = sbr.rel (%p869) target = $region56
      $region55: #{tpu_custom_call.1} parent=5 // pred_region
        %s872 = ssub.s32 %s16, 2
        // Predicated region
        $region57: #{tpu_custom_call.1} parent=55 // pred_check
          %p873 = pneg %p197
        $region58: #{tpu_custom_call.1} parent=55 // pred_check_branch
          %875 = sbr.rel (%p873) target = $region60
        $region59: #{tpu_custom_call.1} parent=55 // pred_region
          %s876 = sand.u32 %s182, 1
          %s877 = scalar_lea.sflag [#allocation3], %s876
          %s878 = sand.u32 %s182, 1
          %s879 = smul.addr %s878, 16
          %s880 = scalar_lea.vmem [#allocation2], %s879
          %882 = dma.done %s877, 256
        $region60: #{tpu_custom_call.1} parent=55 // pred_fallthru
          _
      $region56: #{tpu_custom_call.1} parent=5 // pred_fallthru
        _
    $region6: #{tpu_custom_call.1} parent=1 // loop_footer
      %s20 = sadd.s32 1, %s16
    $region7: #{tpu_custom_call.1} parent=1 // loop_footer_branch
      %15 = sbr.rel target = $region3
    $region8: #{tpu_custom_call.1} parent=1 // loop_exit
      _
    %883 = vsyncpa [#allocation3], 1
    %s884 = scalar_lea.sflag [#allocation3], 1
    %885 = vsyncpa %s884, 1

</llo_original>
